<compile_context>
chip_gen: v5e
topology: v5e:2x2
jax: 0.10.0
libtpu: 0.0.40
codegen_flags: <defaults>
</compile_context>

<pallas_src>
import functools

import jax
import jax.numpy as jnp
from jax.experimental import pallas as pl
from jax.experimental.pallas import tpu as pltpu


# ----------------------------------------------------------------------------
# Kernels
# ----------------------------------------------------------------------------
def _interp_first_kernel(x_ref, m_ref, w_ref, b_ref, o_ref, *, B, C_in, C_out):
    """Interpolate first (one big batched matmul), then apply W per batch.

    x_ref: (B*C_in, L)   full slab, constant across the dim1-tile grid axis
    m_ref: (L, TILE_N)   interpolation matrix tile
    w_ref: (C_out, C_in) conv1x1 weight
    b_ref: (C_out, 1)    conv bias
    o_ref: (B*C_out, TILE_N)
    """
    # Dominant matmul: whole batch folded into the M (row) dimension.
    z = jnp.dot(x_ref[...], m_ref[...],
                preferred_element_type=jnp.float32)          # (B*C_in, TILE_N)
    w = w_ref[...]
    bias = b_ref[...]
    for b in range(B):  # small per-batch channel matmuls (unrolled, tiny)
        zb = z[b * C_in:(b + 1) * C_in, :]                   # (C_in, TILE_N)
        ob = jnp.dot(w, zb, preferred_element_type=jnp.float32) + bias
        o_ref[b * C_out:(b + 1) * C_out, :] = ob.astype(o_ref.dtype)


def _conv_first_kernel(x_ref, m_ref, w_ref, b_ref, o_ref, y_ref,
                       *, B, C_in, C_out):
    """Conv once into a VMEM slab (tile 0), then one big slab @ M per tile.

    y_ref scratch: (B*C_out, L) f32, persists across the dim1-tile axis
    (axis is marked "arbitrary" so the pl.when init is valid).
    """
    @pl.when(pl.program_id(0) == 0)
    def _():
        w = w_ref[...]
        bias = b_ref[...]
        for b in range(B):
            xb = x_ref[b * C_in:(b + 1) * C_in, :]           # (C_in, L)
            y_ref[b * C_out:(b + 1) * C_out, :] = (
                jnp.dot(w, xb, preferred_element_type=jnp.float32) + bias)

    o_ref[...] = jnp.dot(y_ref[...], m_ref[...],
                         preferred_element_type=jnp.float32).astype(o_ref.dtype)


# ----------------------------------------------------------------------------
# Host-side helpers
# ----------------------------------------------------------------------------
def _make_interp_matrix(L, dim1):
    """M (L, dim1) in f32 s.t. y @ M == F.interpolate(y, dim1, mode='linear',
    align_corners=True) along the last axis."""
    if dim1 == 1:
        # align_corners=True with a single output sample -> source index 0
        return (jnp.arange(L)[:, None] == 0).astype(jnp.float32)
    pos = jnp.arange(dim1, dtype=jnp.float32) * (L - 1) / (dim1 - 1)
    i0 = jnp.clip(jnp.floor(pos).astype(jnp.int32), 0, L - 1)
    i1 = jnp.minimum(i0 + 1, L - 1)
    frac = pos - i0.astype(jnp.float32)
    rows = jnp.arange(L)[:, None]                            # (L, 1)
    m = ((rows == i0[None, :]).astype(jnp.float32) * (1.0 - frac)[None, :]
         + (rows == i1[None, :]).astype(jnp.float32) * frac[None, :])
    return m.astype(jnp.float32)


def _pick_tile_n(dim1, B, C_in, C_out, L, m_itemsize, x_itemsize):
    """Largest lane-dense dim1 tile that keeps VMEM under ~20 MiB of the
    32 MiB scoped limit (conservative: double-buffered inputs/outputs +
    conv slab scratch), capped at 1024 lanes."""
    budget = 20 * 1024 * 1024
    fixed = (2 * B * C_in * L * x_itemsize                   # x slab (dbuf)
             + (C_out * C_in + C_out) * x_itemsize           # W + bias
             + B * C_out * L * 4)                            # conv-first scratch
    per_col = (2 * L * m_itemsize                            # M tile (dbuf)
               + 2 * B * C_out * x_itemsize                  # out tile (dbuf)
               + B * (C_in + C_out) * 4)                     # in-kernel temps
    avail = budget - fixed
    max_tile = max(128, int(avail // per_col)) if avail > 0 else 128
    target = min(max_tile, 1024)
    if dim1 <= target:
        return dim1                                          # full-extent block
    return max(128, (target // 128) * 128)                   # multiple of 128


def pointwise_op_1d(x, weight, bias, dim1, *, interp_dtype=jnp.float32):
    """x: (B, C_in, L); weight: (C_out, C_in) or (C_out, C_in, 1); bias: (C_out,).
    Returns (B, C_out, dim1), matching Conv1d(k=1) + interpolate(linear,
    align_corners=True)."""
    if weight.ndim == 3:                                     # torch Conv1d layout
        weight = weight[..., 0]
    B, C_in, L = x.shape
    C_out = weight.shape[0]
    dim1 = int(dim1)
    out_dtype = x.dtype

    m = _make_interp_matrix(L, dim1).astype(interp_dtype)    # (L, dim1)
    w2 = weight.astype(x.dtype)                              # (C_out, C_in)
    bias2 = bias.reshape(C_out, 1).astype(jnp.float32)       # (C_out, 1)
    x_flat = x.reshape(B * C_in, L)                          # free reshape

    # Choose matmul order by MAC count (per batch element).
    macs_interp_first = dim1 * (C_in * L + C_out * C_in)
    macs_conv_first = C_out * C_in * L + C_out * L * dim1
    interp_first = macs_interp_first <= macs_conv_first

    tile_n = _pick_tile_n(dim1, B, C_in, C_out, L,
                          jnp.dtype(interp_dtype).itemsize,
                          jnp.dtype(x.dtype).itemsize)
    grid_n = pl.cdiv(dim1, tile_n)

    x_spec = pl.BlockSpec((B * C_in, L), lambda n: (0, 0))
    m_spec = pl.BlockSpec((L, tile_n), lambda n: (0, n))
    w_spec = pl.BlockSpec((C_out, C_in), lambda n: (0, 0))
    b_spec = pl.BlockSpec((C_out, 1), lambda n: (0, 0))
    o_spec = pl.BlockSpec((B * C_out, tile_n), lambda n: (0, n))

    if interp_first:
        kernel = functools.partial(_interp_first_kernel,
                                   B=B, C_in=C_in, C_out=C_out)
        scratch = []
        semantics = ("parallel",)       # tiles fully independent -> megacore OK
    else:
        kernel = functools.partial(_conv_first_kernel,
                                   B=B, C_in=C_in, C_out=C_out)
        scratch = [pltpu.VMEM((B * C_out, L), jnp.float32)]
        semantics = ("arbitrary",)      # scratch slab persists across tiles

    out_flat = pl.pallas_call(
        kernel,
        out_shape=jax.ShapeDtypeStruct((B * C_out, dim1), out_dtype),
        grid_spec=pltpu.PrefetchScalarGridSpec(
            num_scalar_prefetch=0,
            grid=(grid_n,),
            in_specs=[x_spec, m_spec, w_spec, b_spec],
            out_specs=o_spec,
            scratch_shapes=scratch),
        compiler_params=pltpu.CompilerParams(
            dimension_semantics=semantics,
            vmem_limit_bytes=32 * 1024 * 1024),
    )(x_flat, m, w2, bias2)

    return out_flat.reshape(B, C_out, dim1)                  # free reshape


def _reference(x, weight, bias, dim1):
    """Pure-JAX reference matching PyTorch Conv1d(k=1) + interpolate(linear,
    align_corners=True)."""
    y = jnp.einsum("oi,bil->bol", weight, x) + bias[None, :, None]
    _, _, L = y.shape
    if dim1 == 1:
        return y[..., :1]
    pos = jnp.arange(dim1, dtype=jnp.float32) * (L - 1) / (dim1 - 1)
    i0 = jnp.clip(jnp.floor(pos).astype(jnp.int32), 0, L - 1)
    i1 = jnp.minimum(i0 + 1, L - 1)
    frac = pos - i0.astype(jnp.float32)
    return y[..., i0] * (1.0 - frac) + y[..., i1] * frac


if __name__ == "__main__":
    key = jax.random.PRNGKey(0)
    k1, k2, k3, k4, k5, k6 = jax.random.split(key, 6)

    # Case 1: upsample, C_in < C_out  -> interp-first path (parallel tile axis)
    B, C_in, C_out, L, dim1 = 2, 4, 8, 16, 32
    x = jax.random.normal(k1, (B, C_in, L), dtype=jnp.float32)
    w = jax.random.normal(k2, (C_out, C_in), dtype=jnp.float32) * 0.1
    b = jax.random.normal(k3, (C_out,), dtype=jnp.float32) * 0.1
    out = jax.block_until_ready(pointwise_op_1d(x, w, b, dim1))
    ref = _reference(x, w, b, dim1)
    assert out.shape == (B, C_out, dim1), out.shape
    assert jnp.allclose(out, ref, atol=2e-5, rtol=2e-5), \
        float(jnp.max(jnp.abs(out - ref)))

    # Case 2: downsample, C_in > C_out -> conv-first path (VMEM conv slab)
    B2, C_in2, C_out2, L2, dim1b = 2, 8, 4, 32, 16
    x2 = jax.random.normal(k4, (B2, C_in2, L2), dtype=jnp.float32)
    w2 = jax.random.normal(k5, (C_out2, C_in2), dtype=jnp.float32) * 0.1
    b2 = jax.random.normal(k6, (C_out2,), dtype=jnp.float32) * 0.1
    out2 = jax.block_until_ready(pointwise_op_1d(x2, w2, b2, dim1b))
    ref2 = _reference(x2, w2, b2, dim1b)
    assert out2.shape == (B2, C_out2, dim1b), out2.shape
    assert jnp.allclose(out2, ref2, atol=2e-5, rtol=2e-5), \
        float(jnp.max(jnp.abs(out2 - ref2)))

    print("KERNEL_OK")
</pallas_src>

<mosaic_0001>
module attributes {stable_mosaic.version = 11 : i64} {
  func.func @_interp_first_kernel(%arg0: i32, %arg1: memref<8x16xf32, #tpu.memory_space<vmem>>, %arg2: memref<16x32xf32, #tpu.memory_space<vmem>>, %arg3: memref<8x4xf32, #tpu.memory_space<vmem>>, %arg4: memref<8x1xf32, #tpu.memory_space<vmem>>, %arg5: memref<16x32xf32, #tpu.memory_space<vmem>>) attributes {dimension_semantics = [#tpu.dimension_semantics<parallel>], iteration_bounds = array<i64: 1>, scalar_prefetch = 0 : i64, scratch_operands = 0 : i64, tpu.core_type = #tpu.core_type<tc>, window_params = [{pipeline_mode = #tpu.pipeline_mode<synchronous>, transform_indices = @transform_0, window_bounds = array<i64: 8, 16>}, {transform_indices = @transform_1, window_bounds = array<i64: 16, 32>}, {pipeline_mode = #tpu.pipeline_mode<synchronous>, transform_indices = @transform_2, window_bounds = array<i64: 8, 4>}, {pipeline_mode = #tpu.pipeline_mode<synchronous>, transform_indices = @transform_3, window_bounds = array<i64: 8, 1>}, {transform_indices = @transform_4, window_bounds = array<i64: 16, 32>}]} {
    %c0 = arith.constant 0 : index
    %c0_0 = arith.constant 0 : index
    %0 = vector.load %arg1[%c0, %c0_0] : memref<8x16xf32, #tpu.memory_space<vmem>>, vector<8x16xf32>
    %c0_1 = arith.constant 0 : index
    %c0_2 = arith.constant 0 : index
    %1 = vector.load %arg2[%c0_1, %c0_2] : memref<16x32xf32, #tpu.memory_space<vmem>>, vector<16x32xf32>
    %cst = arith.constant dense<0.000000e+00> : vector<8x32xf32>
    %2 = tpu.matmul %0, %1, %cst {dimension_numbers = #tpu.dot_dimension_numbers<[1], [0], [0], [1], [0, 0, 1, 1], [], []>} : vector<8x16xf32>, vector<16x32xf32>, vector<8x32xf32> -> vector<8x32xf32>
    %c0_3 = arith.constant 0 : index
    %c0_4 = arith.constant 0 : index
    %3 = vector.load %arg3[%c0_3, %c0_4] : memref<8x4xf32, #tpu.memory_space<vmem>>, vector<8x4xf32>
    %c0_5 = arith.constant 0 : index
    %c0_6 = arith.constant 0 : index
    %4 = vector.load %arg4[%c0_5, %c0_6] : memref<8x1xf32, #tpu.memory_space<vmem>>, vector<8x1xf32>
    %5 = vector.extract_strided_slice %2 {offsets = [0, 0], sizes = [4, 32], strides = [1, 1]} : vector<8x32xf32> to vector<4x32xf32>
    %cst_7 = arith.constant dense<0.000000e+00> : vector<8x32xf32>
    %6 = tpu.matmul %3, %5, %cst_7 {dimension_numbers = #tpu.dot_dimension_numbers<[1], [0], [0], [1], [0, 0, 1, 1], [], []>} : vector<8x4xf32>, vector<4x32xf32>, vector<8x32xf32> -> vector<8x32xf32>
    %7 = vector.broadcast %4 : vector<8x1xf32> to vector<8x32xf32>
    %8 = arith.addf %6, %7 : vector<8x32xf32>
    %c0_8 = arith.constant 0 : index
    %c0_9 = arith.constant 0 : index
    %9 = vector.load %arg5[%c0_8, %c0_9] : memref<16x32xf32, #tpu.memory_space<vmem>>, vector<8x32xf32>
    tpu.vector_store %arg5[%c0_8, %c0_9], %8 {strides = array<i32>} : memref<16x32xf32, #tpu.memory_space<vmem>>, vector<8x32xf32>,
    %10 = vector.extract_strided_slice %2 {offsets = [4, 0], sizes = [4, 32], strides = [1, 1]} : vector<8x32xf32> to vector<4x32xf32>
    %cst_10 = arith.constant dense<0.000000e+00> : vector<8x32xf32>
    %11 = tpu.matmul %3, %10, %cst_10 {dimension_numbers = #tpu.dot_dimension_numbers<[1], [0], [0], [1], [0, 0, 1, 1], [], []>} : vector<8x4xf32>, vector<4x32xf32>, vector<8x32xf32> -> vector<8x32xf32>
    %12 = vector.broadcast %4 : vector<8x1xf32> to vector<8x32xf32>
    %13 = arith.addf %11, %12 : vector<8x32xf32>
    %c8 = arith.constant 8 : index
    %c0_11 = arith.constant 0 : index
    %14 = vector.load %arg5[%c8, %c0_11] : memref<16x32xf32, #tpu.memory_space<vmem>>, vector<8x32xf32>
    tpu.vector_store %arg5[%c8, %c0_11], %13 {strides = array<i32>} : memref<16x32xf32, #tpu.memory_space<vmem>>, vector<8x32xf32>,
    return
  }
  func.func @transform_0(%arg0: i32) -> (i32, i32) {
    %c0_i32 = arith.constant 0 : i32
    %c0_i32_0 = arith.constant 0 : i32
    %c0_i32_1 = arith.constant 0 : i32
    return %c0_i32, %c0_i32_0 : i32, i32
  }
  func.func @transform_1(%arg0: i32) -> (i32, i32) {
    %c0_i32 = arith.constant 0 : i32
    %c0_i32_0 = arith.constant 0 : i32
    return %c0_i32, %arg0 : i32, i32
  }
  func.func @transform_2(%arg0: i32) -> (i32, i32) {
    %c0_i32 = arith.constant 0 : i32
    %c0_i32_0 = arith.constant 0 : i32
    %c0_i32_1 = arith.constant 0 : i32
    return %c0_i32, %c0_i32_0 : i32, i32
  }
  func.func @transform_3(%arg0: i32) -> (i32, i32) {
    %c0_i32 = arith.constant 0 : i32
    %c0_i32_0 = arith.constant 0 : i32
    %c0_i32_1 = arith.constant 0 : i32
    return %c0_i32, %c0_i32_0 : i32, i32
  }
  func.func @transform_4(%arg0: i32) -> (i32, i32) {
    %c0_i32 = arith.constant 0 : i32
    %c0_i32_0 = arith.constant 0 : i32
    return %c0_i32, %arg0 : i32, i32
  }
}

</mosaic_0001>

<llo_original>
// kernel: tpu_custom_call.1
$region0: #{tpu_custom_call.1}
  #allocation0 [shape = 'u32[]', space=smem, size = 0x4, offset = 0x4, fixed_abs, tag = 'smem constant byte address 0x4 - core index']
  #allocation1 [shape = 'u32[72,128]{1,0:T(1,128)}', space=vmem, size = 0x9000, scoped, tag = 'internal scratch']
  %s0 = inlined_call_operand.hbm [shape: f32[8,16], index: 0, kind: input, shape index: {}]
  %s1 = inlined_call_operand.vmem [shape: f32[16,32], index: 1, kind: input, shape index: {}]
  %s2 = inlined_call_operand.vmem [shape: f32[8,4], index: 2, kind: input, shape index: {}]
  %s3 = inlined_call_operand.vmem [shape: f32[8,1], index: 3, kind: input, shape index: {}]
  %s4 = inlined_call_operand.hbm [shape: f32[16,32], index: 4, kind: output, shape index: {}]
  %s5 = sld [smem:[#allocation0]]
  $region30: #{tpu_custom_call.1} parent=0
    _
  %s7 = ssub.s32 1, %s5
  %s8 = scalar_select 0, %s7, %s5
  $region1: #{tpu_custom_call.1} parent=0
    #allocation2 [shape = 'u8[4096]{0}', space=vmem, size = 0x1000, scoped, tag = 'input window, operand 0, single buffered']
    #allocation3 [shape = 's32[1]{0}', space=sflag, size = 0x4, scoped, tag = 'scoped memory for tpu_custom_call.1']
    #allocation4 [shape = 's32[1]{0}', space=sflag, size = 0x4, scoped, tag = 'scoped memory for tpu_custom_call.1']
    #allocation5 [shape = 'u8[8192]{0}', space=vmem, size = 0x2000, scoped, tag = 'output window, operand 0, single buffered']
    %9 = vsyncpa [#allocation3], 0
    %10 = vsyncpa [#allocation4], 0
    // Predicated region
    $region2: #{tpu_custom_call.1} parent=1 // pred_check
      _
    $region3: #{tpu_custom_call.1} parent=1 // pred_check_branch
      %12 = sbr.rel (0) target = $region5
    $region4: #{tpu_custom_call.1} parent=1 // pred_region
      %14 = vsyncadd [#allocation3], 0
      %s16 = sshll.u32 %s0, 4
      %s17 = int_to_ptr.hbm [resolvable:$true] %s16
      %s18 = sshll.u32 [#allocation2], 4
      %s19 = int_to_ptr.vmem [resolvable:$true] %s18
      %21 = dma.hbm_to_vmem [thread:$0]  %s17, 128, %s19, [#allocation3]
    $region5: #{tpu_custom_call.1} parent=1 // pred_fallthru
      _
    // Predicated region
    $region6: #{tpu_custom_call.1} parent=1 // pred_check
      _
    $region7: #{tpu_custom_call.1} parent=1 // pred_check_branch
      %23 = sbr.rel (0) target = $region9
    $region8: #{tpu_custom_call.1} parent=1 // pred_region
      _
    $region9: #{tpu_custom_call.1} parent=1 // pred_fallthru
      _
    // Predicated region
    $region10: #{tpu_custom_call.1} parent=1 // pred_check
      _
    $region11: #{tpu_custom_call.1} parent=1 // pred_check_branch
      %25 = sbr.rel (0) target = $region13
    $region12: #{tpu_custom_call.1} parent=1 // pred_region
      _
    $region13: #{tpu_custom_call.1} parent=1 // pred_fallthru
      _
    // Predicated region
    $region14: #{tpu_custom_call.1} parent=1 // pred_check
      _
    $region15: #{tpu_custom_call.1} parent=1 // pred_check_branch
      %27 = sbr.rel (0) target = $region17
    $region16: #{tpu_custom_call.1} parent=1 // pred_region
      _
    $region17: #{tpu_custom_call.1} parent=1 // pred_fallthru
      _
    // Predicated region
    $region18: #{tpu_custom_call.1} parent=1 // pred_check
      _
    $region19: #{tpu_custom_call.1} parent=1 // pred_check_branch
      %29 = sbr.rel (0) target = $region21
    $region20: #{tpu_custom_call.1} parent=1 // pred_region
      %31 = dma.done [#allocation3], 128
    $region21: #{tpu_custom_call.1} parent=1 // pred_fallthru
      _
    %v32 = vld [vmem:[#allocation2] sm:$0xff]
    %v33 = vld [vmem:[%s1] sm:$0xff]
    %v34 = vld [vmem:[%s1 + $0x8] sm:$0xff]
    %vm35 = vcmask 130048
    %v37 = vsel %vm35, %v32, 0
    %39 = vmatpush.msra.mxu0 0.0
    %40 = vmatpush.msra.mxu0 0.0
    %41 = vmatpush.msra.mxu0 0.0
    %42 = vmatpush.msra.mxu0 0.0
    %43 = vmatpush.msra.mxu0 0.0
    %44 = vmatpush.msra.mxu0 0.0
    %45 = vmatpush.msra.mxu0 0.0
    %46 = vmatpush.msra.mxu0 0.0
    %47 = vmatpush.msra.mxu0 0.0
    %48 = vmatpush.msra.mxu0 0.0
    %49 = vmatpush.msra.mxu0 0.0
    %50 = vmatpush.msra.mxu0 0.0
    %51 = vmatpush.msra.mxu0 0.0
    %52 = vmatpush.msra.mxu0 0.0
    %53 = vmatpush.msra.mxu0 %v34
    %54 = vmatpush.msra.mxu0 %v33
    %55 = vmatmul.f32.gmra.mxu0 %v37
    %v56 = vpop.f32.mrf.mxu0
    %v57 = vadd.f32 0.0, %v56
    %58 = vdwg.mxu0
    %v59 = vld [vmem:[%s2] sm:$0xff]
    %v60 = vld [vmem:[%s3] sm:$0xff]
    %62 = vset.pattern.permute.xlu0 0
    %63 = vperm.xlu0 %62, %v60
    %v64 = vpop.permute.xlu0 %63
    %vm66 = vcmask 31744
    %v68 = vsel %vm66, %v59, 0
    %vm70 = vcmask 1043456
    %v72 = vsel %vm70, %v57, 0
    %74 = vmatpush.msra.mxu0 0.0
    %75 = vmatpush.msra.mxu0 0.0
    %76 = vmatpush.msra.mxu0 0.0
    %77 = vmatpush.msra.mxu0 0.0
    %78 = vmatpush.msra.mxu0 0.0
    %79 = vmatpush.msra.mxu0 0.0
    %80 = vmatpush.msra.mxu0 0.0
    %81 = vmatpush.msra.mxu0 0.0
    %82 = vmatpush.msra.mxu0 0.0
    %83 = vmatpush.msra.mxu0 0.0
    %84 = vmatpush.msra.mxu0 0.0
    %85 = vmatpush.msra.mxu0 0.0
    %86 = vmatpush.msra.mxu0 0.0
    %87 = vmatpush.msra.mxu0 0.0
    %88 = vmatpush.msra.mxu0 0.0
    %89 = vmatpush.msra.mxu0 %v72
    %90 = vmatmul.f32.gmra.mxu0 %v68
    %v91 = vpop.f32.mrf.mxu0
    %v92 = vadd.f32 %v64, %v91
    %93 = vdwg.mxu0
    %vm94 = vcmask 261120
    %95 = vst.msk [vmem:[#allocation5] sm:$0xff] %vm94, %v92
    %v96 = vrot.slane %v57, 4
    %v97 = vsel %vm70, %v96, 0
    %99 = vmatpush.msra.mxu0 0.0
    %100 = vmatpush.msra.mxu0 0.0
    %101 = vmatpush.msra.mxu0 0.0
    %102 = vmatpush.msra.mxu0 0.0
    %103 = vmatpush.msra.mxu0 0.0
    %104 = vmatpush.msra.mxu0 0.0
    %105 = vmatpush.msra.mxu0 0.0
    %106 = vmatpush.msra.mxu0 0.0
    %107 = vmatpush.msra.mxu0 0.0
    %108 = vmatpush.msra.mxu0 0.0
    %109 = vmatpush.msra.mxu0 0.0
    %110 = vmatpush.msra.mxu0 0.0
    %111 = vmatpush.msra.mxu0 0.0
    %112 = vmatpush.msra.mxu0 0.0
    %113 = vmatpush.msra.mxu0 0.0
    %114 = vmatpush.msra.mxu0 %v97
    %115 = vmatmul.f32.gmra.mxu0 %v68
    %v116 = vpop.f32.mrf.mxu0
    %v117 = vadd.f32 %v64, %v116
    %118 = vdwg.mxu0
    %119 = vst.msk [vmem:[#allocation5 + $0x8] sm:$0xff] %vm94, %v117
    // Predicated region
    $region22: #{tpu_custom_call.1} parent=1 // pred_check
      _
    $region23: #{tpu_custom_call.1} parent=1 // pred_check_branch
      %121 = sbr.rel (0) target = $region25
    $region24: #{tpu_custom_call.1} parent=1 // pred_region
      %123 = vsyncadd [#allocation4], 0
      %s124 = sshll.u32 [#allocation5], 4
      %s125 = int_to_ptr.vmem [resolvable:$true] %s124
      %s126 = sshll.u32 %s4, 4
      %s127 = int_to_ptr.hbm [resolvable:$true] %s126
      %132 = dma.vmem_to_hbm [thread:$0]  %s125, 256, %s127, [#allocation4], 128, 128, 8
    $region25: #{tpu_custom_call.1} parent=1 // pred_fallthru
      _
    // Predicated region
    $region26: #{tpu_custom_call.1} parent=1 // pred_check
      _
    $region27: #{tpu_custom_call.1} parent=1 // pred_check_branch
      %134 = sbr.rel (0) target = $region29
    $region28: #{tpu_custom_call.1} parent=1 // pred_region
      %136 = dma.done [#allocation4], 256
    $region29: #{tpu_custom_call.1} parent=1 // pred_fallthru
      _
    %137 = vsyncpa [#allocation3], 1
    %138 = vsyncpa [#allocation4], 1

</llo_original>
